<compile_context>
chip_gen: v7x
topology: tpu7x:2x2x1
jax: 0.10.0
libtpu: 0.0.40
codegen_flags: <defaults>
</compile_context>

<pallas_src>
import functools

import jax
import jax.numpy as jnp
import numpy as np
from jax.experimental import pallas as pl
from jax.experimental.pallas import tpu as pltpu


def _round_up(x, m):
    return (x + m - 1) // m * m


def geo_cross_attn_kernel(q_ref, k_ref, v_ref, wqt_ref, wkt_ref, o_ref, *, num_heads):
    Bb, N, dim = q_ref.shape
    NK = k_ref.shape[1]
    C = wqt_ref.shape[1]
    hvp = v_ref.shape[2] // num_heads      # per-head, lane-padded v width (mult of 128)
    hd = C // num_heads

    q = q_ref[...]                          # (Bb, N, dim), native dtype
    k = k_ref[...]                          # (Bb, NK, dim)
    v = v_ref[...]                          # (Bb, NK, H*hvp)
    wq_t = wqt_ref[...]                     # (dim, C), qk scale pre-folded
    wk_t = wkt_ref[...]                     # (dim, C)

    # Shared q/k projections as one big MXU matmul over the flattened batch.
    qp = jnp.dot(q.reshape(Bb * N, dim), wq_t,
                 preferred_element_type=jnp.float32).astype(q.dtype).reshape(Bb, N, C)
    kp = jnp.dot(k.reshape(Bb * NK, dim), wk_t,
                 preferred_element_type=jnp.float32).astype(k.dtype).reshape(Bb, NK, C)

    # Static head loop: num_heads == 1 (module default) takes the no-slice,
    # no-concatenate fast path.
    for h in range(num_heads):
        if num_heads == 1:
            qh, kh, vh = qp, kp, v
        else:
            qh = qp[:, :, h * hd:(h + 1) * hd]
            kh = kp[:, :, h * hd:(h + 1) * hd]
            vh = v[:, :, h * hvp:(h + 1) * hvp]          # 128-aligned lane slice

        # Scores; the qk scale is already folded into wq_t.
        s = jnp.einsum("bnd,bkd->bnk", qh, kh,
                       preferred_element_type=jnp.float32)        # (Bb, N, NK) f32
        s = s - jnp.max(s, axis=-1, keepdims=True)
        p = jnp.exp(s)
        denom = jnp.sum(p, axis=-1, keepdims=True)
        p = p * pl.reciprocal(denom, approx=True)                 # EUP, not VPU divide
        # attn_drop is Dropout(0.0) -> identity; x_map is Identity.

        out_h = jnp.einsum("bnk,bkd->bnd", p.astype(v.dtype), vh,
                           preferred_element_type=jnp.float32)    # (Bb, N, hvp)
        if num_heads == 1:
            o_ref[...] = out_h.astype(o_ref.dtype)                # full-lane store
        else:
            o_ref[:, :, h * hvp:(h + 1) * hvp] = out_h.astype(o_ref.dtype)


def _pick_block_b(B, N, NK, dim, C, Dvp, itemsize):
    """Largest divisor of B whose per-step footprint stays conservatively under
    the default scoped-VMEM limits (16 MiB on v5e; 64 MiB physical on v7x)."""
    budget = 6 * 1024 * 1024
    def footprint(bb):
        io = 2 * bb * (N * dim + NK * dim + NK * Dvp + N * Dvp) * itemsize  # double-buffered blocks
        interm = bb * (N * C + NK * C + N * NK + N * Dvp) * 4               # f32 intermediates
        return io + interm
    best = 1
    for bb in range(1, B + 1):
        if B % bb == 0 and footprint(bb) <= budget:
            best = bb
    return best


def geo_cross_attention(q, k, v, wq, wk, *, num_heads=1, qk_scale=1, block_b=None):
    """Pallas forward of GeoCrossAttention.

    q: (B, N, dim), k: (B, NK, dim), v: (B, NK, Dv)
    wq, wk: PyTorch-layout Linear weights of shape (out_dim, dim), bias=False.
    """
    B, N, dim = q.shape
    NK = k.shape[1]
    Dv = v.shape[2]
    C = wq.shape[0]
    assert C % num_heads == 0, "out_dim must be divisible by num_heads"
    assert Dv % num_heads == 0, "v feature dim must be divisible by num_heads"
    head_dim = C // num_heads
    # Matches the PyTorch `or` semantics: qk_scale=0 falls back to head_dim**-0.5.
    scale = qk_scale or head_dim ** (-0.5)

    hv = Dv // num_heads
    hvp = _round_up(hv, 128)        # lane-dense per-head output width
    Dvp = num_heads * hvp

    # Wrapper-side layout plumbing (cheap, outside the hot loop):
    #   - transpose weights to (dim, C) so the kernel does q @ wq_t directly,
    #   - fold the qk scale into Wq,
    #   - feed weights in the activation dtype so the MXU sees native operands,
    #   - pad v per head to a 128-lane width for a lane-dense matmul/store.
    wq_t = (wq.astype(jnp.float32).T * jnp.float32(scale)).astype(q.dtype)
    wk_t = wk.T.astype(k.dtype)
    if hvp != hv:
        v_in = jnp.pad(v.reshape(B, NK, num_heads, hv),
                       ((0, 0), (0, 0), (0, 0), (0, hvp - hv)))
        v_in = v_in.reshape(B, NK, Dvp)
    else:
        v_in = v

    if block_b is None:
        block_b = _pick_block_b(B, N, NK, dim, C, Dvp, q.dtype.itemsize)
    Bb = block_b
    assert B % Bb == 0, "block_b must divide the batch"
    grid = (B // Bb,)

    kernel = functools.partial(geo_cross_attn_kernel, num_heads=num_heads)

    out_p = pl.pallas_call(
        kernel,
        out_shape=jax.ShapeDtypeStruct((B, N, Dvp), q.dtype),
        grid_spec=pltpu.PrefetchScalarGridSpec(
            num_scalar_prefetch=0,
            grid=grid,
            in_specs=[
                pl.BlockSpec((Bb, N, dim), lambda b: (b, 0, 0)),    # q
                pl.BlockSpec((Bb, NK, dim), lambda b: (b, 0, 0)),   # k
                pl.BlockSpec((Bb, NK, Dvp), lambda b: (b, 0, 0)),   # v (lane-padded)
                pl.BlockSpec((dim, C), lambda b: (0, 0)),           # Wq^T (scale folded)
                pl.BlockSpec((dim, C), lambda b: (0, 0)),           # Wk^T
            ],
            out_specs=pl.BlockSpec((Bb, N, Dvp), lambda b: (b, 0, 0)),
        ),
        # Batch-parallel grid: on v7x the two TensorCores split the grid;
        # on v5e/v6e (single TC) the flag is neutral.
        compiler_params=pltpu.CompilerParams(
            dimension_semantics=("parallel",)),
    )(q, k, v_in, wq_t, wk_t)

    if Dvp != Dv:
        out = out_p.reshape(B, N, num_heads, hvp)[..., :hv].reshape(B, N, Dv)
    else:
        out = out_p
    return out


def _reference(q, k, v, wq, wk, *, num_heads=1, qk_scale=1):
    """Pure-JAX reference mirroring the PyTorch forward."""
    B, N, dim = q.shape
    C = wq.shape[0]
    NK = k.shape[1]
    head_dim = C // num_heads
    scale = qk_scale or head_dim ** (-0.5)
    qp = (q @ wq.T).reshape(B, N, num_heads, C // num_heads).transpose(0, 2, 1, 3)
    kp = (k @ wk.T).reshape(B, NK, num_heads, C // num_heads).transpose(0, 2, 1, 3)
    vp = v.reshape(B, NK, num_heads, -1).transpose(0, 2, 1, 3)
    attn = jnp.einsum("bhnd,bhkd->bhnk", qp, kp) * scale
    attn = jax.nn.softmax(attn, axis=-1)
    x = jnp.einsum("bhnk,bhkd->bhnd", attn, vp).transpose(0, 2, 1, 3)
    return x.reshape(B, N, -1)


if __name__ == "__main__":
    # Module hyper-params (defaults: num_heads=1, qkv_bias=False, qk_scale=1)
    dim = 32        # input feature dim
    out_dim = 32    # projection dim C
    num_heads = 1
    B, N, NK = 2, 8, 8
    Dv = 3          # v feature dim (forward reshapes output to (B, N, 3))

    key = jax.random.PRNGKey(0)
    kq, kk, kv, kwq, kwk = jax.random.split(key, 5)

    q = jax.random.normal(kq, (B, N, dim), dtype=jnp.float32)
    k = jax.random.normal(kk, (B, NK, dim), dtype=jnp.float32)
    v = jax.random.normal(kv, (B, NK, Dv), dtype=jnp.float32)

    # Deterministic Linear weights (torch layout: (out_features, in_features)).
    bound = 1.0 / np.sqrt(dim)
    wq = jax.random.uniform(kwq, (out_dim, dim), minval=-bound, maxval=bound,
                            dtype=jnp.float32)
    wk = jax.random.uniform(kwk, (out_dim, dim), minval=-bound, maxval=bound,
                            dtype=jnp.float32)

    out = geo_cross_attention(q, k, v, wq, wk, num_heads=num_heads, qk_scale=1)
    out = jax.block_until_ready(out)

    ref = _reference(q, k, v, wq, wk, num_heads=num_heads, qk_scale=1)
    # Tolerance accounts for the EUP approximate reciprocal used in the softmax
    # normalization; any structural bug produces O(0.1-1) errors, far above this.
    np.testing.assert_allclose(np.asarray(out), np.asarray(ref),
                               rtol=5e-3, atol=5e-3)
    print("KERNEL_OK")
</pallas_src>

<mosaic_0001>
module attributes {stable_mosaic.version = 11 : i64} {
  func.func @geo_cross_attn_kernel(%arg0: i32, %arg1: memref<2x8x32xf32, #tpu.memory_space<vmem>>, %arg2: memref<2x8x32xf32, #tpu.memory_space<vmem>>, %arg3: memref<2x8x128xf32, #tpu.memory_space<vmem>>, %arg4: memref<32x32xf32, #tpu.memory_space<vmem>>, %arg5: memref<32x32xf32, #tpu.memory_space<vmem>>, %arg6: memref<2x8x128xf32, #tpu.memory_space<vmem>>) attributes {dimension_semantics = [#tpu.dimension_semantics<parallel>], iteration_bounds = array<i64: 1>, scalar_prefetch = 0 : i64, scratch_operands = 0 : i64, tpu.core_type = #tpu.core_type<tc>, window_params = [{transform_indices = @transform_0, window_bounds = array<i64: 2, 8, 32>}, {transform_indices = @transform_1, window_bounds = array<i64: 2, 8, 32>}, {transform_indices = @transform_2, window_bounds = array<i64: 2, 8, 128>}, {pipeline_mode = #tpu.pipeline_mode<synchronous>, transform_indices = @transform_3, window_bounds = array<i64: 32, 32>}, {pipeline_mode = #tpu.pipeline_mode<synchronous>, transform_indices = @transform_4, window_bounds = array<i64: 32, 32>}, {transform_indices = @transform_5, window_bounds = array<i64: 2, 8, 128>}]} {
    %c0 = arith.constant 0 : index
    %c0_0 = arith.constant 0 : index
    %c0_1 = arith.constant 0 : index
    %0 = vector.load %arg1[%c0, %c0_0, %c0_1] : memref<2x8x32xf32, #tpu.memory_space<vmem>>, vector<2x8x32xf32>
    %c0_2 = arith.constant 0 : index
    %c0_3 = arith.constant 0 : index
    %c0_4 = arith.constant 0 : index
    %1 = vector.load %arg2[%c0_2, %c0_3, %c0_4] : memref<2x8x32xf32, #tpu.memory_space<vmem>>, vector<2x8x32xf32>
    %c0_5 = arith.constant 0 : index
    %c0_6 = arith.constant 0 : index
    %c0_7 = arith.constant 0 : index
    %2 = vector.load %arg3[%c0_5, %c0_6, %c0_7] : memref<2x8x128xf32, #tpu.memory_space<vmem>>, vector<2x8x128xf32>
    %c0_8 = arith.constant 0 : index
    %c0_9 = arith.constant 0 : index
    %3 = vector.load %arg4[%c0_8, %c0_9] : memref<32x32xf32, #tpu.memory_space<vmem>>, vector<32x32xf32>
    %c0_10 = arith.constant 0 : index
    %c0_11 = arith.constant 0 : index
    %4 = vector.load %arg5[%c0_10, %c0_11] : memref<32x32xf32, #tpu.memory_space<vmem>>, vector<32x32xf32>
    %5 = vector.shape_cast %0 : vector<2x8x32xf32> to vector<16x32xf32>
    %cst = arith.constant dense<0.000000e+00> : vector<16x32xf32>
    %6 = tpu.matmul %5, %3, %cst {dimension_numbers = #tpu.dot_dimension_numbers<[1], [0], [0], [1], [0, 0, 1, 1], [], []>} : vector<16x32xf32>, vector<32x32xf32>, vector<16x32xf32> -> vector<16x32xf32>
    %7 = vector.shape_cast %6 : vector<16x32xf32> to vector<2x8x32xf32>
    %8 = vector.shape_cast %1 : vector<2x8x32xf32> to vector<16x32xf32>
    %cst_12 = arith.constant dense<0.000000e+00> : vector<16x32xf32>
    %9 = tpu.matmul %8, %4, %cst_12 {dimension_numbers = #tpu.dot_dimension_numbers<[1], [0], [0], [1], [0, 0, 1, 1], [], []>} : vector<16x32xf32>, vector<32x32xf32>, vector<16x32xf32> -> vector<16x32xf32>
    %10 = vector.shape_cast %9 : vector<16x32xf32> to vector<2x8x32xf32>
    "tpu.trace_start"() <{level = 10 : i32, message = "bnd,bkd->bnk"}> : () -> ()
    %cst_13 = arith.constant dense<0.000000e+00> : vector<2x8x8xf32>
    %11 = tpu.matmul %7, %10, %cst_13 {dimension_numbers = #tpu.dot_dimension_numbers<[2], [2], [1], [1], [0, 0, 0, 1, 1, 1], [0], [0]>} : vector<2x8x32xf32>, vector<2x8x32xf32>, vector<2x8x8xf32> -> vector<2x8x8xf32>
    "tpu.trace_stop"() : () -> ()
    %cst_14 = arith.constant dense<0xFF800000> : vector<2x8xf32>
    %12 = vector.multi_reduction <maximumf>, %11, %cst_14 [2] : vector<2x8x8xf32> to vector<2x8xf32>
    %13 = vector.shape_cast %12 : vector<2x8xf32> to vector<2x8x1xf32>
    %14 = vector.broadcast %13 : vector<2x8x1xf32> to vector<2x8x8xf32>
    %15 = arith.subf %11, %14 : vector<2x8x8xf32>
    %16 = math.exp %15 : vector<2x8x8xf32>
    %cst_15 = arith.constant dense<0.000000e+00> : vector<2x8xf32>
    %17 = vector.multi_reduction <add>, %16, %cst_15 [2] : vector<2x8x8xf32> to vector<2x8xf32>
    %18 = vector.shape_cast %17 : vector<2x8xf32> to vector<2x8x1xf32>
    %19 = tpu.reciprocal %18 {approx = true} : vector<2x8x1xf32> -> vector<2x8x1xf32>
    %20 = vector.broadcast %19 : vector<2x8x1xf32> to vector<2x8x8xf32>
    %21 = arith.mulf %16, %20 : vector<2x8x8xf32>
    "tpu.trace_start"() <{level = 10 : i32, message = "bnk,bkd->bnd"}> : () -> ()
    %cst_16 = arith.constant dense<0.000000e+00> : vector<2x8x128xf32>
    %22 = tpu.matmul %21, %2, %cst_16 {dimension_numbers = #tpu.dot_dimension_numbers<[2], [1], [1], [2], [0, 0, 0, 1, 1, 2], [0], [0]>} : vector<2x8x8xf32>, vector<2x8x128xf32>, vector<2x8x128xf32> -> vector<2x8x128xf32>
    "tpu.trace_stop"() : () -> ()
    %c0_17 = arith.constant 0 : index
    %c0_18 = arith.constant 0 : index
    %c0_19 = arith.constant 0 : index
    %23 = vector.load %arg6[%c0_17, %c0_18, %c0_19] : memref<2x8x128xf32, #tpu.memory_space<vmem>>, vector<2x8x128xf32>
    tpu.vector_store %arg6[%c0_17, %c0_18, %c0_19], %22 {strides = array<i32>} : memref<2x8x128xf32, #tpu.memory_space<vmem>>, vector<2x8x128xf32>,
    return
  }
  func.func @transform_0(%arg0: i32) -> (i32, i32, i32) {
    %c0_i32 = arith.constant 0 : i32
    %c0_i32_0 = arith.constant 0 : i32
    %c0_i32_1 = arith.constant 0 : i32
    return %arg0, %c0_i32, %c0_i32_0 : i32, i32, i32
  }
  func.func @transform_1(%arg0: i32) -> (i32, i32, i32) {
    %c0_i32 = arith.constant 0 : i32
    %c0_i32_0 = arith.constant 0 : i32
    %c0_i32_1 = arith.constant 0 : i32
    return %arg0, %c0_i32, %c0_i32_0 : i32, i32, i32
  }
  func.func @transform_2(%arg0: i32) -> (i32, i32, i32) {
    %c0_i32 = arith.constant 0 : i32
    %c0_i32_0 = arith.constant 0 : i32
    %c0_i32_1 = arith.constant 0 : i32
    return %arg0, %c0_i32, %c0_i32_0 : i32, i32, i32
  }
  func.func @transform_3(%arg0: i32) -> (i32, i32) {
    %c0_i32 = arith.constant 0 : i32
    %c0_i32_0 = arith.constant 0 : i32
    %c0_i32_1 = arith.constant 0 : i32
    return %c0_i32, %c0_i32_0 : i32, i32
  }
  func.func @transform_4(%arg0: i32) -> (i32, i32) {
    %c0_i32 = arith.constant 0 : i32
    %c0_i32_0 = arith.constant 0 : i32
    %c0_i32_1 = arith.constant 0 : i32
    return %c0_i32, %c0_i32_0 : i32, i32
  }
  func.func @transform_5(%arg0: i32) -> (i32, i32, i32) {
    %c0_i32 = arith.constant 0 : i32
    %c0_i32_0 = arith.constant 0 : i32
    %c0_i32_1 = arith.constant 0 : i32
    return %arg0, %c0_i32, %c0_i32_0 : i32, i32, i32
  }
}

</mosaic_0001>

<llo_original>
// kernel: tpu_custom_call.1
$region0: #{tpu_custom_call.1}
  #allocation0 [shape = 'u32[]', space=smem, size = 0x4, offset = 0x4, fixed_abs, tag = 'smem constant byte address 0x4 - core index']
  #allocation1 [shape = 'u32[144,128]{1,0:T(1,128)}', space=vmem, size = 0x12000, scoped, tag = 'internal scratch']
  %s0 = inlined_call_operand.hbm [shape: f32[2,8,32], index: 0, kind: input, shape index: {}]
  %s1 = inlined_call_operand.hbm [shape: f32[2,8,32], index: 1, kind: input, shape index: {}]
  %s2 = inlined_call_operand.hbm [shape: f32[2,8,128], index: 2, kind: input, shape index: {}]
  %s3 = inlined_call_operand.hbm [shape: f32[32,32], index: 3, kind: input, shape index: {}]
  %s4 = inlined_call_operand.hbm [shape: f32[32,32], index: 4, kind: input, shape index: {}]
  %s5 = inlined_call_operand.hbm [shape: f32[2,8,128], index: 5, kind: output, shape index: {}]
  %s6 = sld [smem:[#allocation0]]
  $region50: #{tpu_custom_call.1} parent=0
    _
  %s8 = ssub.s32 1, %s6
  %s9 = scalar_select 0, %s8, %s6
  $region1: #{tpu_custom_call.1} parent=0
    #allocation2 [shape = 'u8[8192]{0}', space=vmem, size = 0x2000, scoped, tag = 'input window, operand 0, single buffered']
    #allocation3 [shape = 's32[1]{0}', space=sflag, size = 0x4, scoped, tag = 'scoped memory for tpu_custom_call.1']
    #allocation4 [shape = 's32[1]{0}', space=sflag, size = 0x4, scoped, tag = 'scoped memory for tpu_custom_call.1']
    #allocation5 [shape = 'u8[8192]{0}', space=vmem, size = 0x2000, scoped, tag = 'input window, operand 1, single buffered']
    #allocation6 [shape = 's32[1]{0}', space=sflag, size = 0x4, scoped, tag = 'scoped memory for tpu_custom_call.1']
    #allocation7 [shape = 'u8[8192]{0}', space=vmem, size = 0x2000, scoped, tag = 'input window, operand 2, single buffered']
    #allocation8 [shape = 'u8[16384]{0}', space=vmem, size = 0x4000, scoped, tag = 'input window, operand 3, single buffered']
    #allocation9 [shape = 's32[1]{0}', space=sflag, size = 0x4, scoped, tag = 'scoped memory for tpu_custom_call.1']
    #allocation10 [shape = 'u8[16384]{0}', space=vmem, size = 0x4000, scoped, tag = 'input window, operand 4, single buffered']
    #allocation11 [shape = 'u8[8192]{0}', space=vmem, size = 0x2000, scoped, tag = 'output window, operand 0, single buffered']
    %10 = vsyncpa [#allocation3], 0
    %11 = vsyncpa [#allocation6], 0
    %12 = vsyncpa [#allocation9], 0
    %13 = vsyncpa [#allocation4], 0
    // Predicated region
    $region2: #{tpu_custom_call.1} parent=1 // pred_check
      _
    $region3: #{tpu_custom_call.1} parent=1 // pred_check_branch
      %15 = sbr.rel (0) target = $region5
    $region4: #{tpu_custom_call.1} parent=1 // pred_region
      %s17 = ssub.s32 256, 256
      %18 = vsyncadd [#allocation3], %s17
      %s19 = sshll.u32 [#allocation2], 4
      %s20 = int_to_ptr.vmem [resolvable:$true] %s19
      %25 = dma.hbm_to_vmem [thread:$0]  %s0, 256, %s20, [#allocation3], 128, 128, 8
    $region5: #{tpu_custom_call.1} parent=1 // pred_fallthru
      _
    // Predicated region
    $region6: #{tpu_custom_call.1} parent=1 // pred_check
      _
    $region7: #{tpu_custom_call.1} parent=1 // pred_check_branch
      %27 = sbr.rel (0) target = $region9
    $region8: #{tpu_custom_call.1} parent=1 // pred_region
      %s29 = ssub.s32 256, 256
      %30 = vsyncadd [#allocation6], %s29
      %s31 = sshll.u32 [#allocation5], 4
      %s32 = int_to_ptr.vmem [resolvable:$true] %s31
      %37 = dma.hbm_to_vmem [thread:$0]  %s1, 256, %s32, [#allocation6], 128, 128, 8
    $region9: #{tpu_custom_call.1} parent=1 // pred_fallthru
      _
    // Predicated region
    $region10: #{tpu_custom_call.1} parent=1 // pred_check
      _
    $region11: #{tpu_custom_call.1} parent=1 // pred_check_branch
      %39 = sbr.rel (0) target = $region13
    $region12: #{tpu_custom_call.1} parent=1 // pred_region
      %s41 = ssub.s32 256, 256
      %42 = vsyncadd [#allocation6], %s41
      %s43 = sshll.u32 [#allocation7], 4
      %s44 = int_to_ptr.vmem [resolvable:$true] %s43
      %49 = dma.hbm_to_vmem [thread:$0]  %s2, 256, %s44, [#allocation6], 128, 128, 8
    $region13: #{tpu_custom_call.1} parent=1 // pred_fallthru
      _
    // Predicated region
    $region14: #{tpu_custom_call.1} parent=1 // pred_check
      _
    $region15: #{tpu_custom_call.1} parent=1 // pred_check_branch
      %51 = sbr.rel (0) target = $region17
    $region16: #{tpu_custom_call.1} parent=1 // pred_region
      %s53 = ssub.s32 512, 512
      %54 = vsyncadd [#allocation9], %s53
      %s55 = sshll.u32 [#allocation8], 4
      %s56 = int_to_ptr.vmem [resolvable:$true] %s55
      %61 = dma.hbm_to_vmem [thread:$0]  %s3, 512, %s56, [#allocation9], 128, 128, 8
    $region17: #{tpu_custom_call.1} parent=1 // pred_fallthru
      _
    // Predicated region
    $region18: #{tpu_custom_call.1} parent=1 // pred_check
      _
    $region19: #{tpu_custom_call.1} parent=1 // pred_check_branch
      %63 = sbr.rel (0) target = $region21
    $region20: #{tpu_custom_call.1} parent=1 // pred_region
      %s65 = ssub.s32 512, 512
      %66 = vsyncadd [#allocation9], %s65
      %s67 = sshll.u32 [#allocation10], 4
      %s68 = int_to_ptr.vmem [resolvable:$true] %s67
      %73 = dma.hbm_to_vmem [thread:$0]  %s4, 512, %s68, [#allocation9], 128, 128, 8
    $region21: #{tpu_custom_call.1} parent=1 // pred_fallthru
      _
    // Predicated region
    $region22: #{tpu_custom_call.1} parent=1 // pred_check
      _
    $region23: #{tpu_custom_call.1} parent=1 // pred_check_branch
      %75 = sbr.rel (0) target = $region25
    $region24: #{tpu_custom_call.1} parent=1 // pred_region
      %76 = dma.done [#allocation3], 256
    $region25: #{tpu_custom_call.1} parent=1 // pred_fallthru
      _
    // Predicated region
    $region26: #{tpu_custom_call.1} parent=1 // pred_check
      _
    $region27: #{tpu_custom_call.1} parent=1 // pred_check_branch
      %78 = sbr.rel (0) target = $region29
    $region28: #{tpu_custom_call.1} parent=1 // pred_region
      %79 = dma.done [#allocation6], 256
    $region29: #{tpu_custom_call.1} parent=1 // pred_fallthru
      _
    // Predicated region
    $region30: #{tpu_custom_call.1} parent=1 // pred_check
      _
    $region31: #{tpu_custom_call.1} parent=1 // pred_check_branch
      %81 = sbr.rel (0) target = $region33
    $region32: #{tpu_custom_call.1} parent=1 // pred_region
      %82 = dma.done [#allocation6], 256
    $region33: #{tpu_custom_call.1} parent=1 // pred_fallthru
      _
    // Predicated region
    $region34: #{tpu_custom_call.1} parent=1 // pred_check
      _
    $region35: #{tpu_custom_call.1} parent=1 // pred_check_branch
      %84 = sbr.rel (0) target = $region37
    $region36: #{tpu_custom_call.1} parent=1 // pred_region
      %85 = dma.done [#allocation9], 512
    $region37: #{tpu_custom_call.1} parent=1 // pred_fallthru
      _
    // Predicated region
    $region38: #{tpu_custom_call.1} parent=1 // pred_check
      _
    $region39: #{tpu_custom_call.1} parent=1 // pred_check_branch
      %87 = sbr.rel (0) target = $region41
    $region40: #{tpu_custom_call.1} parent=1 // pred_region
      %88 = dma.done [#allocation9], 512
    $region41: #{tpu_custom_call.1} parent=1 // pred_fallthru
      _
    %v89 = vld [vmem:[#allocation2] sm:$0xff]
    %v90 = vld [vmem:[#allocation2 + $0x8] sm:$0xff]
    %v91 = vld [vmem:[#allocation5] sm:$0xff]
    %v92 = vld [vmem:[#allocation5 + $0x8] sm:$0xff]
    %v93 = vld [vmem:[#allocation7] sm:$0xff]
    %v94 = vld [vmem:[#allocation7 + $0x8] sm:$0xff]
    %v95 = vld [vmem:[#allocation8] sm:$0xff]
    %v96 = vld [vmem:[#allocation8 + $0x8] sm:$0xff]
    %v97 = vld [vmem:[#allocation8 + $0x10] sm:$0xff]
    %v98 = vld [vmem:[#allocation8 + $0x18] sm:$0xff]
    %v99 = vld [vmem:[#allocation10] sm:$0xff]
    %v100 = vld [vmem:[#allocation10 + $0x8] sm:$0xff]
    %v101 = vld [vmem:[#allocation10 + $0x10] sm:$0xff]
    %v102 = vld [vmem:[#allocation10 + $0x18] sm:$0xff]
    %vm103 = vcmask 261120
    %v105 = vsel %vm103, %v89, 0
    %v108 = vsel %vm103, %v90, 0
    %110 = vmatprep.subr.mxu0 0.0
    %111 = vmatpush1.msra.mxu0 %v95
    %112 = vmatprep.subr.mxu0 0.0
    %113 = vmatpush1.msra.mxu0 %v96
    %114 = vmatprep.subr.mxu0 0.0
    %115 = vmatpush1.msra.mxu0 %v97
    %116 = vmatprep.subr.mxu0 0.0
    %117 = vmatpush1.msra.mxu0 %v98
    %118 = vmatprep.subr.mxu0 0.0
    %119 = vmatpush1.msra.mxu0 0.0
    %120 = vmatprep.subr.mxu0 0.0
    %121 = vmatpush1.msra.mxu0 0.0
    %122 = vmatprep.subr.mxu0 0.0
    %123 = vmatpush1.msra.mxu0 0.0
    %124 = vmatprep.subr.mxu0 0.0
    %125 = vmatpush1.msra.mxu0 0.0
    %126 = vmatprep.subr.mxu0 0.0
    %127 = vmatpush1.msra.mxu0 0.0
    %128 = vmatprep.subr.mxu0 0.0
    %129 = vmatpush1.msra.mxu0 0.0
    %130 = vmatprep.subr.mxu0 0.0
    %131 = vmatpush1.msra.mxu0 0.0
    %132 = vmatprep.subr.mxu0 0.0
    %133 = vmatpush1.msra.mxu0 0.0
    %134 = vmatprep.subr.mxu0 0.0
    %135 = vmatpush1.msra.mxu0 0.0
    %136 = vmatprep.subr.mxu0 0.0
    %137 = vmatpush1.msra.mxu0 0.0
    %138 = vmatprep.subr.mxu0 0.0
    %139 = vmatpush1.msra.mxu0 0.0
    %140 = vmatprep.subr.mxu0 0.0
    %141 = vmatpush1.msra.mxu0 0.0
    %142 = vmatprep.subr.mxu0 0.0
    %143 = vmatpush1.msra.mxu0 0.0
    %144 = vmatprep.subr.mxu0 0.0
    %145 = vmatpush1.msra.mxu0 0.0
    %146 = vmatprep.subr.mxu0 0.0
    %147 = vmatpush1.msra.mxu0 0.0
    %148 = vmatprep.subr.mxu0 0.0
    %149 = vmatpush1.msra.mxu0 0.0
    %150 = vmatprep.subr.mxu0 0.0
    %151 = vmatpush1.msra.mxu0 0.0
    %152 = vmatprep.subr.mxu0 0.0
    %153 = vmatpush1.msra.mxu0 0.0
    %154 = vmatprep.subr.mxu0 0.0
    %155 = vmatpush1.msra.mxu0 0.0
    %156 = vmatprep.subr.mxu0 0.0
    %157 = vmatpush1.msra.mxu0 0.0
    %158 = vmatprep.subr.mxu0 0.0
    %159 = vmatpush1.msra.mxu0 0.0
    %160 = vmatprep.subr.mxu0 0.0
    %161 = vmatpush1.msra.mxu0 0.0
    %162 = vmatprep.subr.mxu0 0.0
    %163 = vmatpush1.msra.mxu0 0.0
    %164 = vmatprep.subr.mxu0 0.0
    %165 = vmatpush1.msra.mxu0 0.0
    %166 = vmatprep.subr.mxu0 0.0
    %167 = vmatpush1.msra.mxu0 0.0
    %168 = vmatprep.subr.mxu0 0.0
    %169 = vmatpush1.msra.mxu0 0.0
    %170 = vmatprep.subr.mxu0 0.0
    %171 = vmatpush1.msra.mxu0 0.0
    %172 = vmatprep.subr.mxu0 0.0
    %173 = vmatpush1.msra.mxu0 0.0
    %174 = vmatprep.mubr.f32.mxu0 0.0
    %175 = vmatmul.mubr.f32.gmra.mrb[0].mxu0 %v105
    %v176 = vpop.f32.mrb[0].mxu0
    %v177 = vadd.f32 0.0, %v176
    %v178 = vpop.f32.mrb[0].mxu0
    %179 = vmatprep.mubr.f32.mxu0 0.0
    %180 = vmatmul.mubr.f32.gmra.mrb[0].mxu0 %v108
    %v181 = vpop.f32.mrb[0].mxu0
    %v182 = vadd.f32 0.0, %v181
    %v183 = vpop.f32.mrb[0].mxu0
    %184 = vdwg.mxu0
    %v186 = vsel %vm103, %v91, 0
    %v189 = vsel %vm103, %v92, 0
    %191 = vmatprep.subr.mxu0 0.0
    %192 = vmatpush1.msra.mxu0 %v99
    %193 = vmatprep.subr.mxu0 0.0
    %194 = vmatpush1.msra.mxu0 %v100
    %195 = vmatprep.subr.mxu0 0.0
    %196 = vmatpush1.msra.mxu0 %v101
    %197 = vmatprep.subr.mxu0 0.0
    %198 = vmatpush1.msra.mxu0 %v102
    %199 = vmatprep.subr.mxu0 0.0
    %200 = vmatpush1.msra.mxu0 0.0
    %201 = vmatprep.subr.mxu0 0.0
    %202 = vmatpush1.msra.mxu0 0.0
    %203 = vmatprep.subr.mxu0 0.0
    %204 = vmatpush1.msra.mxu0 0.0
    %205 = vmatprep.subr.mxu0 0.0
    %206 = vmatpush1.msra.mxu0 0.0
    %207 = vmatprep.subr.mxu0 0.0
    %208 = vmatpush1.msra.mxu0 0.0
    %209 = vmatprep.subr.mxu0 0.0
    %210 = vmatpush1.msra.mxu0 0.0
    %211 = vmatprep.subr.mxu0 0.0
    %212 = vmatpush1.msra.mxu0 0.0
    %213 = vmatprep.subr.mxu0 0.0
    %214 = vmatpush1.msra.mxu0 0.0
    %215 = vmatprep.subr.mxu0 0.0
    %216 = vmatpush1.msra.mxu0 0.0
    %217 = vmatprep.subr.mxu0 0.0
    %218 = vmatpush1.msra.mxu0 0.0
    %219 = vmatprep.subr.mxu0 0.0
    %220 = vmatpush1.msra.mxu0 0.0
    %221 = vmatprep.subr.mxu0 0.0
    %222 = vmatpush1.msra.mxu0 0.0
    %223 = vmatprep.subr.mxu0 0.0
    %224 = vmatpush1.msra.mxu0 0.0
    %225 = vmatprep.subr.mxu0 0.0
    %226 = vmatpush1.msra.mxu0 0.0
    %227 = vmatprep.subr.mxu0 0.0
    %228 = vmatpush1.msra.mxu0 0.0
    %229 = vmatprep.subr.mxu0 0.0
    %230 = vmatpush1.msra.mxu0 0.0
    %231 = vmatprep.subr.mxu0 0.0
    %232 = vmatpush1.msra.mxu0 0.0
    %233 = vmatprep.subr.mxu0 0.0
    %234 = vmatpush1.msra.mxu0 0.0
    %235 = vmatprep.subr.mxu0 0.0
    %236 = vmatpush1.msra.mxu0 0.0
    %237 = vmatprep.subr.mxu0 0.0
    %238 = vmatpush1.msra.mxu0 0.0
    %239 = vmatprep.subr.mxu0 0.0
    %240 = vmatpush1.msra.mxu0 0.0
    %241 = vmatprep.subr.mxu0 0.0
    %242 = vmatpush1.msra.mxu0 0.0
    %243 = vmatprep.subr.mxu0 0.0
    %244 = vmatpush1.msra.mxu0 0.0
    %245 = vmatprep.subr.mxu0 0.0
    %246 = vmatpush1.msra.mxu0 0.0
    %247 = vmatprep.subr.mxu0 0.0
    %248 = vmatpush1.msra.mxu0 0.0
    %249 = vmatprep.subr.mxu0 0.0
    %250 = vmatpush1.msra.mxu0 0.0
    %251 = vmatprep.subr.mxu0 0.0
    %252 = vmatpush1.msra.mxu0 0.0
    %253 = vmatprep.subr.mxu0 0.0
    %254 = vmatpush1.msra.mxu0 0.0
    %255 = vmatprep.mubr.f32.mxu0 0.0
    %256 = vmatmul.mubr.f32.gmra.mrb[0].mxu0 %v186
    %v257 = vpop.f32.mrb[0].mxu0
    %v258 = vadd.f32 0.0, %v257
    %v259 = vpop.f32.mrb[0].mxu0
    %260 = vmatprep.mubr.f32.mxu0 0.0
    %261 = vmatmul.mubr.f32.gmra.mrb[0].mxu0 %v189
    %v262 = vpop.f32.mrb[0].mxu0
    %v263 = vadd.f32 0.0, %v262
    %v264 = vpop.f32.mrb[0].mxu0
    %265 = vdwg.mxu0
    %v267 = vsel %vm103, %v177, 0
    %v270 = vsel %vm103, %v258, 0
    %272 = vmatprep.subr.mxu0 0.0
    %273 = vmatpush1.xpose.msra.mxu0 %v270
    %274 = vmatprep.subr.mxu0 0.0
    %275 = vmatpush1.xpose.msra.mxu0 0.0
    %276 = vmatprep.subr.mxu0 0.0
    %277 = vmatpush1.xpose.msra.mxu0 0.0
    %278 = vmatprep.subr.mxu0 0.0
    %279 = vmatpush1.xpose.msra.mxu0 0.0
    %280 = vmatprep.subr.mxu0 0.0
    %281 = vmatpush1.xpose.msra.mxu0 0.0
    %282 = vmatprep.subr.mxu0 0.0
    %283 = vmatpush1.xpose.msra.mxu0 0.0
    %284 = vmatprep.subr.mxu0 0.0
    %285 = vmatpush1.xpose.msra.mxu0 0.0
    %286 = vmatprep.subr.mxu0 0.0
    %287 = vmatpush1.xpose.msra.mxu0 0.0
    %288 = vmatprep.subr.mxu0 0.0
    %289 = vmatpush1.xpose.msra.mxu0 0.0
    %290 = vmatprep.subr.mxu0 0.0
    %291 = vmatpush1.xpose.msra.mxu0 0.0
    %292 = vmatprep.subr.mxu0 0.0
    %293 = vmatpush1.xpose.msra.mxu0 0.0
    %294 = vmatprep.subr.mxu0 0.0
    %295 = vmatpush1.xpose.msra.mxu0 0.0
    %296 = vmatprep.subr.mxu0 0.0
    %297 = vmatpush1.xpose.msra.mxu0 0.0
    %298 = vmatprep.subr.mxu0 0.0
    %299 = vmatpush1.xpose.msra.mxu0 0.0
    %300 = vmatprep.subr.mxu0 0.0
    %301 = vmatpush1.xpose.msra.mxu0 0.0
    %302 = vmatprep.subr.mxu0 0.0
    %303 = vmatpush1.xpose.msra.mxu0 0.0
    %304 = vmatprep.subr.mxu0 0.0
    %305 = vmatpush1.xpose.msra.mxu0 0.0
    %306 = vmatprep.subr.mxu0 0.0
    %307 = vmatpush1.xpose.msra.mxu0 0.0
    %308 = vmatprep.subr.mxu0 0.0
    %309 = vmatpush1.xpose.msra.mxu0 0.0
    %310 = vmatprep.subr.mxu0 0.0
    %311 = vmatpush1.xpose.msra.mxu0 0.0
    %312 = vmatprep.subr.mxu0 0.0
    %313 = vmatpush1.xpose.msra.mxu0 0.0
    %314 = vmatprep.subr.mxu0 0.0
    %315 = vmatpush1.xpose.msra.mxu0 0.0
    %316 = vmatprep.subr.mxu0 0.0
    %317 = vmatpush1.xpose.msra.mxu0 0.0
    %318 = vmatprep.subr.mxu0 0.0
    %319 = vmatpush1.xpose.msra.mxu0 0.0
    %320 = vmatprep.subr.mxu0 0.0
    %321 = vmatpush1.xpose.msra.mxu0 0.0
    %322 = vmatprep.subr.mxu0 0.0
    %323 = vmatpush1.xpose.msra.mxu0 0.0
    %324 = vmatprep.subr.mxu0 0.0
    %325 = vmatpush1.xpose.msra.mxu0 0.0
    %326 = vmatprep.subr.mxu0 0.0
    %327 = vmatpush1.xpose.msra.mxu0 0.0
    %328 = vmatprep.subr.mxu0 0.0
    %329 = vmatpush1.xpose.msra.mxu0 0.0
    %330 = vmatprep.subr.mxu0 0.0
    %331 = vmatpush1.xpose.msra.mxu0 0.0
    %332 = vmatprep.subr.mxu0 0.0
    %333 = vmatpush1.xpose.msra.mxu0 0.0
    %334 = vmatprep.subr.mxu0 0.0
    %335 = vmatpush1.xpose.msra.mxu0 0.0
    %336 = vmatprep.mubr.f32.mxu0 0.0
    %337 = vmatmul.mubr.f32.gmra.mrb[0].mxu0 %v267
    %v338 = vpop.f32.mrb[0].mxu0
    %v339 = vadd.f32 0.0, %v338
    %v340 = vpop.f32.mrb[0].mxu0
    %341 = vdwg.mxu0
    %v343 = vsel %vm103, %v182, 0
    %v346 = vsel %vm103, %v263, 0
    %348 = vmatprep.subr.mxu0 0.0
    %349 = vmatpush1.xpose.msra.mxu0 %v346
    %350 = vmatprep.subr.mxu0 0.0
    %351 = vmatpush1.xpose.msra.mxu0 0.0
    %352 = vmatprep.subr.mxu0 0.0
    %353 = vmatpush1.xpose.msra.mxu0 0.0
    %354 = vmatprep.subr.mxu0 0.0
    %355 = vmatpush1.xpose.msra.mxu0 0.0
    %356 = vmatprep.subr.mxu0 0.0
    %357 = vmatpush1.xpose.msra.mxu0 0.0
    %358 = vmatprep.subr.mxu0 0.0
    %359 = vmatpush1.xpose.msra.mxu0 0.0
    %360 = vmatprep.subr.mxu0 0.0
    %361 = vmatpush1.xpose.msra.mxu0 0.0
    %362 = vmatprep.subr.mxu0 0.0
    %363 = vmatpush1.xpose.msra.mxu0 0.0
    %364 = vmatprep.subr.mxu0 0.0
    %365 = vmatpush1.xpose.msra.mxu0 0.0
    %366 = vmatprep.subr.mxu0 0.0
    %367 = vmatpush1.xpose.msra.mxu0 0.0
    %368 = vmatprep.subr.mxu0 0.0
    %369 = vmatpush1.xpose.msra.mxu0 0.0
    %370 = vmatprep.subr.mxu0 0.0
    %371 = vmatpush1.xpose.msra.mxu0 0.0
    %372 = vmatprep.subr.mxu0 0.0
    %373 = vmatpush1.xpose.msra.mxu0 0.0
    %374 = vmatprep.subr.mxu0 0.0
    %375 = vmatpush1.xpose.msra.mxu0 0.0
    %376 = vmatprep.subr.mxu0 0.0
    %377 = vmatpush1.xpose.msra.mxu0 0.0
    %378 = vmatprep.subr.mxu0 0.0
    %379 = vmatpush1.xpose.msra.mxu0 0.0
    %380 = vmatprep.subr.mxu0 0.0
    %381 = vmatpush1.xpose.msra.mxu0 0.0
    %382 = vmatprep.subr.mxu0 0.0
    %383 = vmatpush1.xpose.msra.mxu0 0.0
    %384 = vmatprep.subr.mxu0 0.0
    %385 = vmatpush1.xpose.msra.mxu0 0.0
    %386 = vmatprep.subr.mxu0 0.0
    %387 = vmatpush1.xpose.msra.mxu0 0.0
    %388 = vmatprep.subr.mxu0 0.0
    %389 = vmatpush1.xpose.msra.mxu0 0.0
    %390 = vmatprep.subr.mxu0 0.0
    %391 = vmatpush1.xpose.msra.mxu0 0.0
    %392 = vmatprep.subr.mxu0 0.0
    %393 = vmatpush1.xpose.msra.mxu0 0.0
    %394 = vmatprep.subr.mxu0 0.0
    %395 = vmatpush1.xpose.msra.mxu0 0.0
    %396 = vmatprep.subr.mxu0 0.0
    %397 = vmatpush1.xpose.msra.mxu0 0.0
    %398 = vmatprep.subr.mxu0 0.0
    %399 = vmatpush1.xpose.msra.mxu0 0.0
    %400 = vmatprep.subr.mxu0 0.0
    %401 = vmatpush1.xpose.msra.mxu0 0.0
    %402 = vmatprep.subr.mxu0 0.0
    %403 = vmatpush1.xpose.msra.mxu0 0.0
    %404 = vmatprep.subr.mxu0 0.0
    %405 = vmatpush1.xpose.msra.mxu0 0.0
    %406 = vmatprep.subr.mxu0 0.0
    %407 = vmatpush1.xpose.msra.mxu0 0.0
    %408 = vmatprep.subr.mxu0 0.0
    %409 = vmatpush1.xpose.msra.mxu0 0.0
    %410 = vmatprep.subr.mxu0 0.0
    %411 = vmatpush1.xpose.msra.mxu0 0.0
    %412 = vmatprep.mubr.f32.mxu0 0.0
    %413 = vmatmul.mubr.f32.gmra.mrb[0].mxu0 %v343
    %v414 = vpop.f32.mrb[0].mxu0
    %v415 = vadd.f32 0.0, %v414
    %v416 = vpop.f32.mrb[0].mxu0
    %417 = vdwg.mxu0
    %vm418 = vcmask 64512
    %v419 = vsel %vm418, %v339, -inf
    %420 = vmax.xlane.f32.xlu0 %v419
    %v421 = vpop.xlane.xlu0 %420
    %v422 = vsel %vm418, %v415, -inf
    %423 = vmax.xlane.f32.xlu0 %v422
    %v424 = vpop.xlane.xlu0 %423
    %v425 = vsub.f32 %v339, %v421
    %v426 = vsub.f32 %v415, %v424
    %v427 = vmul.f32 %v425, 1.442695
    %v428 = vpow.pop %v427
    %v429 = vmul.f32 %v426, 1.442695
    %v430 = vpow.pop %v429
    %v431 = vsel %vm418, %v428, 0.0
    %432 = vadd.xlane.f32.xlu0 %v431
    %v433 = vpop.xlane.xlu0 %432
    %v434 = vsel %vm418, %v430, 0.0
    %435 = vadd.xlane.f32.xlu0 %v434
    %v436 = vpop.xlane.xlu0 %435
    %v437 = vrcp.pop %v433
    %v438 = vrcp.pop %v436
    %v439 = vmul.f32 %v428, %v437
    %v440 = vmul.f32 %v430, %v438
    %v442 = vsel %vm418, %v439, 0
    %444 = vmatprep.subr.mxu0 0.0
    %445 = vmatpush1.msra.mxu0 %v93
    %446 = vmatprep.subr.mxu0 0.0
    %447 = vmatpush1.msra.mxu0 0.0
    %448 = vmatprep.subr.mxu0 0.0
    %449 = vmatpush1.msra.mxu0 0.0
    %450 = vmatprep.subr.mxu0 0.0
    %451 = vmatpush1.msra.mxu0 0.0
    %452 = vmatprep.subr.mxu0 0.0
    %453 = vmatpush1.msra.mxu0 0.0
    %454 = vmatprep.subr.mxu0 0.0
    %455 = vmatpush1.msra.mxu0 0.0
    %456 = vmatprep.subr.mxu0 0.0
    %457 = vmatpush1.msra.mxu0 0.0
    %458 = vmatprep.subr.mxu0 0.0
    %459 = vmatpush1.msra.mxu0 0.0
    %460 = vmatprep.subr.mxu0 0.0
    %461 = vmatpush1.msra.mxu0 0.0
    %462 = vmatprep.subr.mxu0 0.0
    %463 = vmatpush1.msra.mxu0 0.0
    %464 = vmatprep.subr.mxu0 0.0
    %465 = vmatpush1.msra.mxu0 0.0
    %466 = vmatprep.subr.mxu0 0.0
    %467 = vmatpush1.msra.mxu0 0.0
    %468 = vmatprep.subr.mxu0 0.0
    %469 = vmatpush1.msra.mxu0 0.0
    %470 = vmatprep.subr.mxu0 0.0
    %471 = vmatpush1.msra.mxu0 0.0
    %472 = vmatprep.subr.mxu0 0.0
    %473 = vmatpush1.msra.mxu0 0.0
    %474 = vmatprep.subr.mxu0 0.0
    %475 = vmatpush1.msra.mxu0 0.0
    %476 = vmatprep.subr.mxu0 0.0
    %477 = vmatpush1.msra.mxu0 0.0
    %478 = vmatprep.subr.mxu0 0.0
    %479 = vmatpush1.msra.mxu0 0.0
    %480 = vmatprep.subr.mxu0 0.0
    %481 = vmatpush1.msra.mxu0 0.0
    %482 = vmatprep.subr.mxu0 0.0
    %483 = vmatpush1.msra.mxu0 0.0
    %484 = vmatprep.subr.mxu0 0.0
    %485 = vmatpush1.msra.mxu0 0.0
    %486 = vmatprep.subr.mxu0 0.0
    %487 = vmatpush1.msra.mxu0 0.0
    %488 = vmatprep.subr.mxu0 0.0
    %489 = vmatpush1.msra.mxu0 0.0
    %490 = vmatprep.subr.mxu0 0.0
    %491 = vmatpush1.msra.mxu0 0.0
    %492 = vmatprep.subr.mxu0 0.0
    %493 = vmatpush1.msra.mxu0 0.0
    %494 = vmatprep.subr.mxu0 0.0
    %495 = vmatpush1.msra.mxu0 0.0
    %496 = vmatprep.subr.mxu0 0.0
    %497 = vmatpush1.msra.mxu0 0.0
    %498 = vmatprep.subr.mxu0 0.0
    %499 = vmatpush1.msra.mxu0 0.0
    %500 = vmatprep.subr.mxu0 0.0
    %501 = vmatpush1.msra.mxu0 0.0
    %502 = vmatprep.subr.mxu0 0.0
    %503 = vmatpush1.msra.mxu0 0.0
    %504 = vmatprep.subr.mxu0 0.0
    %505 = vmatpush1.msra.mxu0 0.0
    %506 = vmatprep.subr.mxu0 0.0
    %507 = vmatpush1.msra.mxu0 0.0
    %508 = vmatprep.mubr.f32.mxu0 0.0
    %509 = vmatmul.mubr.f32.gmra.mrb[0].mxu0 %v442
    %v510 = vpop.f32.mrb[0].mxu0
    %v511 = vadd.f32 0.0, %v510
    %v512 = vpop.f32.mrb[0].mxu0
    %513 = vdwg.mxu0
    %v515 = vsel %vm418, %v440, 0
    %517 = vmatprep.subr.mxu0 0.0
    %518 = vmatpush1.msra.mxu0 %v94
    %519 = vmatprep.subr.mxu0 0.0
    %520 = vmatpush1.msra.mxu0 0.0
    %521 = vmatprep.subr.mxu0 0.0
    %522 = vmatpush1.msra.mxu0 0.0
    %523 = vmatprep.subr.mxu0 0.0
    %524 = vmatpush1.msra.mxu0 0.0
    %525 = vmatprep.subr.mxu0 0.0
    %526 = vmatpush1.msra.mxu0 0.0
    %527 = vmatprep.subr.mxu0 0.0
    %528 = vmatpush1.msra.mxu0 0.0
    %529 = vmatprep.subr.mxu0 0.0
    %530 = vmatpush1.msra.mxu0 0.0
    %531 = vmatprep.subr.mxu0 0.0
    %532 = vmatpush1.msra.mxu0 0.0
    %533 = vmatprep.subr.mxu0 0.0
    %534 = vmatpush1.msra.mxu0 0.0
    %535 = vmatprep.subr.mxu0 0.0
    %536 = vmatpush1.msra.mxu0 0.0
    %537 = vmatprep.subr.mxu0 0.0
    %538 = vmatpush1.msra.mxu0 0.0
    %539 = vmatprep.subr.mxu0 0.0
    %540 = vmatpush1.msra.mxu0 0.0
    %541 = vmatprep.subr.mxu0 0.0
    %542 = vmatpush1.msra.mxu0 0.0
    %543 = vmatprep.subr.mxu0 0.0
    %544 = vmatpush1.msra.mxu0 0.0
    %545 = vmatprep.subr.mxu0 0.0
    %546 = vmatpush1.msra.mxu0 0.0
    %547 = vmatprep.subr.mxu0 0.0
    %548 = vmatpush1.msra.mxu0 0.0
    %549 = vmatprep.subr.mxu0 0.0
    %550 = vmatpush1.msra.mxu0 0.0
    %551 = vmatprep.subr.mxu0 0.0
    %552 = vmatpush1.msra.mxu0 0.0
    %553 = vmatprep.subr.mxu0 0.0
    %554 = vmatpush1.msra.mxu0 0.0
    %555 = vmatprep.subr.mxu0 0.0
    %556 = vmatpush1.msra.mxu0 0.0
    %557 = vmatprep.subr.mxu0 0.0
    %558 = vmatpush1.msra.mxu0 0.0
    %559 = vmatprep.subr.mxu0 0.0
    %560 = vmatpush1.msra.mxu0 0.0
    %561 = vmatprep.subr.mxu0 0.0
    %562 = vmatpush1.msra.mxu0 0.0
    %563 = vmatprep.subr.mxu0 0.0
    %564 = vmatpush1.msra.mxu0 0.0
    %565 = vmatprep.subr.mxu0 0.0
    %566 = vmatpush1.msra.mxu0 0.0
    %567 = vmatprep.subr.mxu0 0.0
    %568 = vmatpush1.msra.mxu0 0.0
    %569 = vmatprep.subr.mxu0 0.0
    %570 = vmatpush1.msra.mxu0 0.0
    %571 = vmatprep.subr.mxu0 0.0
    %572 = vmatpush1.msra.mxu0 0.0
    %573 = vmatprep.subr.mxu0 0.0
    %574 = vmatpush1.msra.mxu0 0.0
    %575 = vmatprep.subr.mxu0 0.0
    %576 = vmatpush1.msra.mxu0 0.0
    %577 = vmatprep.subr.mxu0 0.0
    %578 = vmatpush1.msra.mxu0 0.0
    %579 = vmatprep.subr.mxu0 0.0
    %580 = vmatpush1.msra.mxu0 0.0
    %581 = vmatprep.mubr.f32.mxu0 0.0
    %582 = vmatmul.mubr.f32.gmra.mrb[0].mxu0 %v515
    %v583 = vpop.f32.mrb[0].mxu0
    %v584 = vadd.f32 0.0, %v583
    %v585 = vpop.f32.mrb[0].mxu0
    %586 = vdwg.mxu0
    %587 = vst [vmem:[#allocation11] sm:$0xff] %v511
    %588 = vst [vmem:[#allocation11 + $0x8] sm:$0xff] %v584
    // Predicated region
    $region42: #{tpu_custom_call.1} parent=1 // pred_check
      _
    $region43: #{tpu_custom_call.1} parent=1 // pred_check_branch
      %590 = sbr.rel (0) target = $region45
    $region44: #{tpu_custom_call.1} parent=1 // pred_region
      %s592 = ssub.s32 256, 256
      %593 = vsyncadd [#allocation4], %s592
      %s594 = sshll.u32 [#allocation11], 4
      %s595 = int_to_ptr.vmem [resolvable:$true] %s594
      %600 = dma.vmem_to_hbm [thread:$0]  %s595, 256, %s5, [#allocation4], 128, 128, 8
    $region45: #{tpu_custom_call.1} parent=1 // pred_fallthru
      _
    // Predicated region
    $region46: #{tpu_custom_call.1} parent=1 // pred_check
      _
    $region47: #{tpu_custom_call.1} parent=1 // pred_check_branch
      %602 = sbr.rel (0) target = $region49
    $region48: #{tpu_custom_call.1} parent=1 // pred_region
      %603 = dma.done [#allocation4], 256
    $region49: #{tpu_custom_call.1} parent=1 // pred_fallthru
      _
    %604 = vsyncpa [#allocation3], 1
    %605 = vsyncpa [#allocation6], 1
    %606 = vsyncpa [#allocation9], 1
    %607 = vsyncpa [#allocation4], 1

</llo_original>
